<compile_context>
chip_gen: v7x
topology: tpu7x:2x2x1
jax: 0.10.0
libtpu: 0.0.40
codegen_flags: <defaults>
</compile_context>

<pallas_src>
from functools import partial

import numpy as np
import jax
import jax.numpy as jnp
from jax import lax
from jax.experimental import pallas as pl
from jax.experimental.pallas import tpu as pltpu

IN_F, H1, H2 = 24, 50, 100   # feature sizes from CustomRNN.__init__
FP = 128                     # lane-dense padded feature width (24 -> 128)
HP = 128                     # lane-dense padded hidden width (50/100 -> 128)


# ---------------------------------------------------------------------------
# Kernels
# ---------------------------------------------------------------------------
def _make_serial_kernel(num_appliance: int):
    """flag=True: greedy subtraction of the own prediction -> true serial carry
    over appliances.  Weights are whole-array VMEM-resident; the appliance loop
    is a fori_loop (bounded live ranges), grid axis is over batch-row tiles."""
    unroll = bool(num_appliance <= 4)

    def kernel(x_ref, w1, b1, w2, b2, w3, b3, o_ref):
        agg0 = x_ref[...].astype(jnp.float32)                     # (TN, FP)

        def body(a, agg):
            h = jnp.maximum(
                jnp.dot(agg, w1[a], preferred_element_type=jnp.float32) + b1[a], 0.0)
            h = jnp.maximum(
                jnp.dot(h, w2[a], preferred_element_type=jnp.float32) + b2[a], 0.0)
            h = jnp.maximum(
                jnp.dot(h, w3[a], preferred_element_type=jnp.float32) + b3[a], 0.0)
            pred = jnp.minimum(h, agg)                            # torch.min(pred, x)
            o_ref[a] = pred.astype(o_ref.dtype)
            return agg - pred                                     # greedy carry

        lax.fori_loop(0, num_appliance, body, agg0, unroll=unroll)

    return kernel


def _independent_kernel(agg_ref, w1, b1, w2, b2, w3, b3, o_ref):
    """flag=False: aggregates are precomputed in the wrapper, so each
    (appliance, batch-tile) grid point is fully independent."""
    agg = agg_ref[0].astype(jnp.float32)                          # (TN, FP)
    h = jnp.maximum(
        jnp.dot(agg, w1[0], preferred_element_type=jnp.float32) + b1[0], 0.0)
    h = jnp.maximum(
        jnp.dot(h, w2[0], preferred_element_type=jnp.float32) + b2[0], 0.0)
    h = jnp.maximum(
        jnp.dot(h, w3[0], preferred_element_type=jnp.float32) + b3[0], 0.0)
    o_ref[0] = jnp.minimum(h, agg).astype(o_ref.dtype)


# ---------------------------------------------------------------------------
# One-time parameter preparation (hoisted out of the per-call path):
# eval-BN folded into downstream Linear, everything zero-padded to 128 lanes.
# ---------------------------------------------------------------------------
def prepare_params(params, param_dtype=jnp.float32):
    """Call ONCE at parameter-load time; pass the result to every forward call.
    param_dtype=jnp.bfloat16 halves weight DMA/VMEM on v6e/v7x (dots still
    accumulate in f32)."""
    (w1, b1, s1, t1, w2, b2, s2, t2, w3, b3) = params

    # ReLU precedes BN, so the per-feature scale/shift commutes exactly into
    # the next matmul:  (h*s + t) @ W + b  ==  h @ (diag(s) @ W) + (t @ W + b)
    w2f = w2 * s1[:, 0, :, None]                                  # (A, H1, H2)
    b2f = b2 + jnp.einsum('aif,afg->aig', t1, w2)                 # (A, 1, H2)
    w3f = w3 * s2[:, 0, :, None]                                  # (A, H2, 24)
    b3f = b3 + jnp.einsum('aif,afg->aig', t2, w3)                 # (A, 1, 24)

    def pad_to(a, axis, size):
        pad = [(0, 0)] * a.ndim
        pad[axis] = (0, size - a.shape[axis])
        return jnp.pad(a, pad) if size > a.shape[axis] else a

    # Zero padding keeps padded activations exactly 0 through ReLU/min/sub.
    w1p = pad_to(pad_to(w1, 1, FP), 2, HP)                        # (A, 128, 128)
    b1p = pad_to(b1, 2, HP)                                       # (A, 1, 128)
    w2p = pad_to(pad_to(w2f, 1, HP), 2, HP)                       # (A, 128, 128)
    b2p = pad_to(b2f, 2, HP)                                      # (A, 1, 128)
    w3p = pad_to(pad_to(w3f, 1, HP), 2, FP)                       # (A, 128, 128)
    b3p = pad_to(b3f, 2, FP)                                      # (A, 1, 128)
    prepared = (w1p, b1p, w2p, b2p, w3p, b3p)
    return tuple(p.astype(param_dtype) for p in prepared)


# ---------------------------------------------------------------------------
# Wrapper (jitted; `flag` is static so each branch compiles once)
# ---------------------------------------------------------------------------
def _round_up(x, m):
    return (x + m - 1) // m * m


def _pad_axis(a, axis, size):
    if size <= a.shape[axis]:
        return a
    pad = [(0, 0)] * a.ndim
    pad[axis] = (0, size - a.shape[axis])
    return jnp.pad(a, pad)


@partial(jax.jit, static_argnames=("flag",))
def appliances_rnn_forward(x, trues, prepared, *, flag):
    """x: (N, 24) aggregate; trues: (A, N, 24) ground-truth appliance signals
    (args[2:] of AppliancesRNN.forward); prepared: output of prepare_params.
    Returns (A*N, 24) = torch.cat of the per-appliance predictions."""
    flag = bool(flag)
    w1, b1, w2, b2, w3, b3 = prepared
    A = w1.shape[0]
    N = x.shape[0]
    dtype = x.dtype
    itemsize = dtype.itemsize

    # Batch-row tiling: fill the MXU height when N is large; round tiny N to 8.
    TN = _round_up(N, 8) if _round_up(N, 8) <= 256 else 256
    Np = _round_up(N, TN)
    nN = Np // TN

    xp = _pad_axis(_pad_axis(x, 1, FP), 0, Np)                    # (Np, 128)

    param_bytes = sum(int(p.size) * p.dtype.itemsize for p in prepared)
    flops = 2 * A * Np * (FP * HP + HP * HP + HP * FP)
    io_bytes = (Np * FP + 2 * A * Np * FP) * itemsize
    cost = pl.CostEstimate(flops=flops, transcendentals=0,
                           bytes_accessed=param_bytes + io_bytes)

    if flag:
        # Serial greedy carry over appliances; parallel grid over batch tiles.
        grid = (nN,)
        dims = ("parallel",)
        kernel = _make_serial_kernel(A)
        inputs = (xp, w1, b1, w2, b2, w3, b3)
        in_specs = [
            pl.BlockSpec((TN, FP), lambda n: (n, 0)),
            pl.BlockSpec((A, FP, HP), lambda n: (0, 0, 0)),
            pl.BlockSpec((A, 1, HP), lambda n: (0, 0, 0)),
            pl.BlockSpec((A, HP, HP), lambda n: (0, 0, 0)),
            pl.BlockSpec((A, 1, HP), lambda n: (0, 0, 0)),
            pl.BlockSpec((A, HP, FP), lambda n: (0, 0, 0)),
            pl.BlockSpec((A, 1, FP), lambda n: (0, 0, 0)),
        ]
        out_specs = pl.BlockSpec((A, TN, FP), lambda n: (0, n, 0))
        resident = param_bytes + 2 * (TN * FP + A * TN * FP) * itemsize
    else:
        # No real dependency between appliances: precompute the aggregates
        # aggs[a] = x - sum_{b<a} true_b, and run a fully parallel grid.
        tp = _pad_axis(_pad_axis(trues.astype(dtype), 2, FP), 1, Np)  # (A, Np, 128)
        csum = jnp.cumsum(tp, axis=0)
        prev = jnp.concatenate([jnp.zeros_like(csum[:1]), csum[:-1]], axis=0)
        aggs = xp[None] - prev                                        # (A, Np, 128)

        grid = (A, nN)
        dims = ("parallel", "parallel")
        kernel = _independent_kernel
        inputs = (aggs, w1, b1, w2, b2, w3, b3)
        in_specs = [
            pl.BlockSpec((1, TN, FP), lambda a, n: (a, n, 0)),
            pl.BlockSpec((1, FP, HP), lambda a, n: (a, 0, 0)),
            pl.BlockSpec((1, 1, HP), lambda a, n: (a, 0, 0)),
            pl.BlockSpec((1, HP, HP), lambda a, n: (a, 0, 0)),
            pl.BlockSpec((1, 1, HP), lambda a, n: (a, 0, 0)),
            pl.BlockSpec((1, HP, FP), lambda a, n: (a, 0, 0)),
            pl.BlockSpec((1, 1, FP), lambda a, n: (a, 0, 0)),
        ]
        out_specs = pl.BlockSpec((1, TN, FP), lambda a, n: (a, n, 0))
        resident = 2 * (param_bytes // A) + 4 * TN * FP * itemsize

    # Explicit VMEM budget (double-buffering margin), capped below v7x's 64 MiB.
    vmem_limit = int(min(max(2 * resident + (4 << 20), 16 << 20), 64 << 20))

    out = pl.pallas_call(
        kernel,
        out_shape=jax.ShapeDtypeStruct((A, Np, FP), dtype),
        grid=grid,
        in_specs=in_specs,
        out_specs=out_specs,
        compiler_params=pltpu.CompilerParams(
            dimension_semantics=dims,
            vmem_limit_bytes=vmem_limit),
        cost_estimate=cost,
    )(*inputs)

    # Drop row/lane padding and lay out as torch.cat([pred_0, ..., pred_{A-1}]).
    return out[:, :N, :IN_F].reshape(A * N, IN_F)


# ---------------------------------------------------------------------------
# Parameter init + plain-JAX reference (uses UN-folded, UN-padded params so
# the fold/pad transformation is validated numerically).
# ---------------------------------------------------------------------------
def init_params(key, num_appliance):
    """Deterministic per-appliance parameters (shapes from CustomRNN.__init__).
    Linear layers use PyTorch-style U(-1/sqrt(fan_in), 1/sqrt(fan_in)); the
    eval-mode BatchNorm1d layers are expressed as per-feature scale/shift."""
    ks = jax.random.split(key, 16)

    def lin(kw, kb, fan_in, fan_out):
        bound = 1.0 / np.sqrt(fan_in)
        w = jax.random.uniform(kw, (num_appliance, fan_in, fan_out),
                               jnp.float32, -bound, bound)
        b = jax.random.uniform(kb, (num_appliance, 1, fan_out),
                               jnp.float32, -bound, bound)
        return w, b

    def bn(kg, kb, km, kv, feat, eps=1e-5):
        gamma = jax.random.uniform(kg, (num_appliance, 1, feat), jnp.float32, 0.5, 1.5)
        beta = 0.1 * jax.random.normal(kb, (num_appliance, 1, feat), jnp.float32)
        r_mean = 0.1 * jax.random.normal(km, (num_appliance, 1, feat), jnp.float32)
        r_var = jax.random.uniform(kv, (num_appliance, 1, feat), jnp.float32, 0.5, 1.5)
        scale = gamma / jnp.sqrt(r_var + eps)
        shift = beta - r_mean * scale
        return scale, shift

    w1, b1 = lin(ks[0], ks[1], IN_F, H1)
    s1, t1 = bn(ks[2], ks[3], ks[4], ks[5], H1)
    w2, b2 = lin(ks[6], ks[7], H1, H2)
    s2, t2 = bn(ks[8], ks[9], ks[10], ks[11], H2)
    w3, b3 = lin(ks[12], ks[13], H2, IN_F)
    return (w1, b1, s1, t1, w2, b2, s2, t2, w3, b3)


def reference_forward(x, trues, params, flag):
    """Plain-JAX reference of AppliancesRNN.forward (eval mode)."""
    (w1, b1, s1, t1, w2, b2, s2, t2, w3, b3) = params
    A = trues.shape[0]
    agg = x.astype(jnp.float32)
    preds = []
    for a in range(A):
        h = jnp.maximum(agg @ w1[a] + b1[a], 0.0) * s1[a] + t1[a]
        h = jnp.maximum(h @ w2[a] + b2[a], 0.0) * s2[a] + t2[a]
        h = jnp.maximum(h @ w3[a] + b3[a], 0.0)
        pred = jnp.minimum(h, agg)
        preds.append(pred)
        agg = agg - pred if flag else agg - trues[a].astype(jnp.float32)
    return jnp.concatenate(preds, axis=0)


if __name__ == "__main__":
    NUM_APPLIANCE = 3
    N = 8          # batch (rows of the aggregate signal matrix)
    P_THRESH = 0.5

    # Mimic `np.random.random() > args[1]` deterministically (drawn once,
    # staged as a static kernel specialization — intentional staging decision).
    np.random.seed(0)
    flag = bool(np.random.random() > P_THRESH)

    key = jax.random.PRNGKey(0)
    k_x, k_t, k_p = jax.random.split(key, 3)
    # Aggregate power signal (non-negative-ish) and ground-truth appliance signals.
    x = jnp.abs(jax.random.normal(k_x, (N, IN_F), jnp.float32))
    trues = 0.1 * jnp.abs(jax.random.normal(k_t, (NUM_APPLIANCE, N, IN_F), jnp.float32))
    params = init_params(k_p, NUM_APPLIANCE)

    # Hoisted: BN-fold + lane-padding done ONCE, outside the per-call path.
    prepared = prepare_params(params)

    out = appliances_rnn_forward(x, trues, prepared, flag=flag)
    out = jax.block_until_ready(out)
    assert out.shape == (NUM_APPLIANCE * N, IN_F)

    ref = reference_forward(x, trues, params, flag)
    # Tolerance bounded by the MXU's default f32 (bf16-pass) matmul precision,
    # since the kernel contracts with BN-folded weights.
    np.testing.assert_allclose(np.asarray(out), np.asarray(ref), rtol=1e-2, atol=1e-2)

    # Exercise the other specialization as well (serial vs. parallel kernels).
    out_o = jax.block_until_ready(
        appliances_rnn_forward(x, trues, prepared, flag=not flag))
    ref_o = reference_forward(x, trues, params, not flag)
    np.testing.assert_allclose(np.asarray(out_o), np.asarray(ref_o), rtol=1e-2, atol=1e-2)

    print("KERNEL_OK")
</pallas_src>

<mosaic_0001>
module attributes {stable_mosaic.version = 11 : i64} {
  func.func @kernel(%arg0: i32, %arg1: memref<8x128xf32, #tpu.memory_space<vmem>>, %arg2: memref<3x128x128xf32, #tpu.memory_space<vmem>>, %arg3: memref<3x1x128xf32, #tpu.memory_space<vmem>>, %arg4: memref<3x128x128xf32, #tpu.memory_space<vmem>>, %arg5: memref<3x1x128xf32, #tpu.memory_space<vmem>>, %arg6: memref<3x128x128xf32, #tpu.memory_space<vmem>>, %arg7: memref<3x1x128xf32, #tpu.memory_space<vmem>>, %arg8: memref<3x8x128xf32, #tpu.memory_space<vmem>>) attributes {dimension_semantics = [#tpu.dimension_semantics<parallel>], iteration_bounds = array<i64: 1>, scalar_prefetch = 0 : i64, scratch_operands = 0 : i64, tpu.core_type = #tpu.core_type<tc>, window_params = [{transform_indices = @transform_0, window_bounds = array<i64: 8, 128>}, {pipeline_mode = #tpu.pipeline_mode<synchronous>, transform_indices = @transform_1, window_bounds = array<i64: 3, 128, 128>}, {pipeline_mode = #tpu.pipeline_mode<synchronous>, transform_indices = @transform_2, window_bounds = array<i64: 3, 1, 128>}, {pipeline_mode = #tpu.pipeline_mode<synchronous>, transform_indices = @transform_3, window_bounds = array<i64: 3, 128, 128>}, {pipeline_mode = #tpu.pipeline_mode<synchronous>, transform_indices = @transform_4, window_bounds = array<i64: 3, 1, 128>}, {pipeline_mode = #tpu.pipeline_mode<synchronous>, transform_indices = @transform_5, window_bounds = array<i64: 3, 128, 128>}, {pipeline_mode = #tpu.pipeline_mode<synchronous>, transform_indices = @transform_6, window_bounds = array<i64: 3, 1, 128>}, {transform_indices = @transform_7, window_bounds = array<i64: 3, 8, 128>}]} {
    %c0 = arith.constant 0 : index
    %c0_0 = arith.constant 0 : index
    %0 = vector.load %arg1[%c0, %c0_0] : memref<8x128xf32, #tpu.memory_space<vmem>>, vector<8x128xf32>
    %c0_i32 = arith.constant 0 : i32
    %1 = arith.index_cast %c0_i32 : i32 to index
    %c0_1 = arith.constant 0 : index
    %c0_2 = arith.constant 0 : index
    %2 = vector.load %arg2[%1, %c0_1, %c0_2] : memref<3x128x128xf32, #tpu.memory_space<vmem>>, vector<1x128x128xf32>
    %3 = vector.shape_cast %2 : vector<1x128x128xf32> to vector<128x128xf32>
    %cst = arith.constant dense<0.000000e+00> : vector<8x128xf32>
    %4 = tpu.matmul %0, %3, %cst {dimension_numbers = #tpu.dot_dimension_numbers<[1], [0], [0], [1], [0, 0, 1, 1], [], []>} : vector<8x128xf32>, vector<128x128xf32>, vector<8x128xf32> -> vector<8x128xf32>
    %5 = arith.index_cast %c0_i32 : i32 to index
    %c0_3 = arith.constant 0 : index
    %c0_4 = arith.constant 0 : index
    %6 = vector.load %arg3[%5, %c0_3, %c0_4] : memref<3x1x128xf32, #tpu.memory_space<vmem>>, vector<1x1x128xf32>
    %7 = vector.shape_cast %6 : vector<1x1x128xf32> to vector<1x128xf32>
    %8 = vector.broadcast %7 : vector<1x128xf32> to vector<8x128xf32>
    %9 = arith.addf %4, %8 : vector<8x128xf32>
    %cst_5 = arith.constant 0.000000e+00 : f32
    %10 = vector.broadcast %cst_5 : f32 to vector<8x128xf32>
    %11 = arith.maximumf %9, %10 : vector<8x128xf32>
    %12 = arith.index_cast %c0_i32 : i32 to index
    %c0_6 = arith.constant 0 : index
    %c0_7 = arith.constant 0 : index
    %13 = vector.load %arg4[%12, %c0_6, %c0_7] : memref<3x128x128xf32, #tpu.memory_space<vmem>>, vector<1x128x128xf32>
    %14 = vector.shape_cast %13 : vector<1x128x128xf32> to vector<128x128xf32>
    %cst_8 = arith.constant dense<0.000000e+00> : vector<8x128xf32>
    %15 = tpu.matmul %11, %14, %cst_8 {dimension_numbers = #tpu.dot_dimension_numbers<[1], [0], [0], [1], [0, 0, 1, 1], [], []>} : vector<8x128xf32>, vector<128x128xf32>, vector<8x128xf32> -> vector<8x128xf32>
    %16 = arith.index_cast %c0_i32 : i32 to index
    %c0_9 = arith.constant 0 : index
    %c0_10 = arith.constant 0 : index
    %17 = vector.load %arg5[%16, %c0_9, %c0_10] : memref<3x1x128xf32, #tpu.memory_space<vmem>>, vector<1x1x128xf32>
    %18 = vector.shape_cast %17 : vector<1x1x128xf32> to vector<1x128xf32>
    %19 = vector.broadcast %18 : vector<1x128xf32> to vector<8x128xf32>
    %20 = arith.addf %15, %19 : vector<8x128xf32>
    %cst_11 = arith.constant 0.000000e+00 : f32
    %21 = vector.broadcast %cst_11 : f32 to vector<8x128xf32>
    %22 = arith.maximumf %20, %21 : vector<8x128xf32>
    %23 = arith.index_cast %c0_i32 : i32 to index
    %c0_12 = arith.constant 0 : index
    %c0_13 = arith.constant 0 : index
    %24 = vector.load %arg6[%23, %c0_12, %c0_13] : memref<3x128x128xf32, #tpu.memory_space<vmem>>, vector<1x128x128xf32>
    %25 = vector.shape_cast %24 : vector<1x128x128xf32> to vector<128x128xf32>
    %cst_14 = arith.constant dense<0.000000e+00> : vector<8x128xf32>
    %26 = tpu.matmul %22, %25, %cst_14 {dimension_numbers = #tpu.dot_dimension_numbers<[1], [0], [0], [1], [0, 0, 1, 1], [], []>} : vector<8x128xf32>, vector<128x128xf32>, vector<8x128xf32> -> vector<8x128xf32>
    %27 = arith.index_cast %c0_i32 : i32 to index
    %c0_15 = arith.constant 0 : index
    %c0_16 = arith.constant 0 : index
    %28 = vector.load %arg7[%27, %c0_15, %c0_16] : memref<3x1x128xf32, #tpu.memory_space<vmem>>, vector<1x1x128xf32>
    %29 = vector.shape_cast %28 : vector<1x1x128xf32> to vector<1x128xf32>
    %30 = vector.broadcast %29 : vector<1x128xf32> to vector<8x128xf32>
    %31 = arith.addf %26, %30 : vector<8x128xf32>
    %cst_17 = arith.constant 0.000000e+00 : f32
    %32 = vector.broadcast %cst_17 : f32 to vector<8x128xf32>
    %33 = arith.maximumf %31, %32 : vector<8x128xf32>
    %34 = arith.minimumf %33, %0 : vector<8x128xf32>
    %35 = arith.index_cast %c0_i32 : i32 to index
    %c0_18 = arith.constant 0 : index
    %c0_19 = arith.constant 0 : index
    %36 = vector.load %arg8[%35, %c0_18, %c0_19] : memref<3x8x128xf32, #tpu.memory_space<vmem>>, vector<1x8x128xf32>
    %37 = vector.shape_cast %36 : vector<1x8x128xf32> to vector<8x128xf32>
    %38 = vector.shape_cast %34 : vector<8x128xf32> to vector<1x8x128xf32>
    tpu.vector_store %arg8[%35, %c0_18, %c0_19], %38 {strides = array<i32>} : memref<3x8x128xf32, #tpu.memory_space<vmem>>, vector<1x8x128xf32>,
    %39 = arith.subf %0, %34 : vector<8x128xf32>
    %c1_i32 = arith.constant 1 : i32
    %40 = arith.index_cast %c1_i32 : i32 to index
    %c0_20 = arith.constant 0 : index
    %c0_21 = arith.constant 0 : index
    %41 = vector.load %arg2[%40, %c0_20, %c0_21] : memref<3x128x128xf32, #tpu.memory_space<vmem>>, vector<1x128x128xf32>
    %42 = vector.shape_cast %41 : vector<1x128x128xf32> to vector<128x128xf32>
    %cst_22 = arith.constant dense<0.000000e+00> : vector<8x128xf32>
    %43 = tpu.matmul %39, %42, %cst_22 {dimension_numbers = #tpu.dot_dimension_numbers<[1], [0], [0], [1], [0, 0, 1, 1], [], []>} : vector<8x128xf32>, vector<128x128xf32>, vector<8x128xf32> -> vector<8x128xf32>
    %44 = arith.index_cast %c1_i32 : i32 to index
    %c0_23 = arith.constant 0 : index
    %c0_24 = arith.constant 0 : index
    %45 = vector.load %arg3[%44, %c0_23, %c0_24] : memref<3x1x128xf32, #tpu.memory_space<vmem>>, vector<1x1x128xf32>
    %46 = vector.shape_cast %45 : vector<1x1x128xf32> to vector<1x128xf32>
    %47 = vector.broadcast %46 : vector<1x128xf32> to vector<8x128xf32>
    %48 = arith.addf %43, %47 : vector<8x128xf32>
    %cst_25 = arith.constant 0.000000e+00 : f32
    %49 = vector.broadcast %cst_25 : f32 to vector<8x128xf32>
    %50 = arith.maximumf %48, %49 : vector<8x128xf32>
    %51 = arith.index_cast %c1_i32 : i32 to index
    %c0_26 = arith.constant 0 : index
    %c0_27 = arith.constant 0 : index
    %52 = vector.load %arg4[%51, %c0_26, %c0_27] : memref<3x128x128xf32, #tpu.memory_space<vmem>>, vector<1x128x128xf32>
    %53 = vector.shape_cast %52 : vector<1x128x128xf32> to vector<128x128xf32>
    %cst_28 = arith.constant dense<0.000000e+00> : vector<8x128xf32>
    %54 = tpu.matmul %50, %53, %cst_28 {dimension_numbers = #tpu.dot_dimension_numbers<[1], [0], [0], [1], [0, 0, 1, 1], [], []>} : vector<8x128xf32>, vector<128x128xf32>, vector<8x128xf32> -> vector<8x128xf32>
    %55 = arith.index_cast %c1_i32 : i32 to index
    %c0_29 = arith.constant 0 : index
    %c0_30 = arith.constant 0 : index
    %56 = vector.load %arg5[%55, %c0_29, %c0_30] : memref<3x1x128xf32, #tpu.memory_space<vmem>>, vector<1x1x128xf32>
    %57 = vector.shape_cast %56 : vector<1x1x128xf32> to vector<1x128xf32>
    %58 = vector.broadcast %57 : vector<1x128xf32> to vector<8x128xf32>
    %59 = arith.addf %54, %58 : vector<8x128xf32>
    %cst_31 = arith.constant 0.000000e+00 : f32
    %60 = vector.broadcast %cst_31 : f32 to vector<8x128xf32>
    %61 = arith.maximumf %59, %60 : vector<8x128xf32>
    %62 = arith.index_cast %c1_i32 : i32 to index
    %c0_32 = arith.constant 0 : index
    %c0_33 = arith.constant 0 : index
    %63 = vector.load %arg6[%62, %c0_32, %c0_33] : memref<3x128x128xf32, #tpu.memory_space<vmem>>, vector<1x128x128xf32>
    %64 = vector.shape_cast %63 : vector<1x128x128xf32> to vector<128x128xf32>
    %cst_34 = arith.constant dense<0.000000e+00> : vector<8x128xf32>
    %65 = tpu.matmul %61, %64, %cst_34 {dimension_numbers = #tpu.dot_dimension_numbers<[1], [0], [0], [1], [0, 0, 1, 1], [], []>} : vector<8x128xf32>, vector<128x128xf32>, vector<8x128xf32> -> vector<8x128xf32>
    %66 = arith.index_cast %c1_i32 : i32 to index
    %c0_35 = arith.constant 0 : index
    %c0_36 = arith.constant 0 : index
    %67 = vector.load %arg7[%66, %c0_35, %c0_36] : memref<3x1x128xf32, #tpu.memory_space<vmem>>, vector<1x1x128xf32>
    %68 = vector.shape_cast %67 : vector<1x1x128xf32> to vector<1x128xf32>
    %69 = vector.broadcast %68 : vector<1x128xf32> to vector<8x128xf32>
    %70 = arith.addf %65, %69 : vector<8x128xf32>
    %cst_37 = arith.constant 0.000000e+00 : f32
    %71 = vector.broadcast %cst_37 : f32 to vector<8x128xf32>
    %72 = arith.maximumf %70, %71 : vector<8x128xf32>
    %73 = arith.minimumf %72, %39 : vector<8x128xf32>
    %74 = arith.index_cast %c1_i32 : i32 to index
    %c0_38 = arith.constant 0 : index
    %c0_39 = arith.constant 0 : index
    %75 = vector.load %arg8[%74, %c0_38, %c0_39] : memref<3x8x128xf32, #tpu.memory_space<vmem>>, vector<1x8x128xf32>
    %76 = vector.shape_cast %75 : vector<1x8x128xf32> to vector<8x128xf32>
    %77 = vector.shape_cast %73 : vector<8x128xf32> to vector<1x8x128xf32>
    tpu.vector_store %arg8[%74, %c0_38, %c0_39], %77 {strides = array<i32>} : memref<3x8x128xf32, #tpu.memory_space<vmem>>, vector<1x8x128xf32>,
    %78 = arith.subf %39, %73 : vector<8x128xf32>
    %c2_i32 = arith.constant 2 : i32
    %79 = arith.index_cast %c2_i32 : i32 to index
    %c0_40 = arith.constant 0 : index
    %c0_41 = arith.constant 0 : index
    %80 = vector.load %arg2[%79, %c0_40, %c0_41] : memref<3x128x128xf32, #tpu.memory_space<vmem>>, vector<1x128x128xf32>
    %81 = vector.shape_cast %80 : vector<1x128x128xf32> to vector<128x128xf32>
    %cst_42 = arith.constant dense<0.000000e+00> : vector<8x128xf32>
    %82 = tpu.matmul %78, %81, %cst_42 {dimension_numbers = #tpu.dot_dimension_numbers<[1], [0], [0], [1], [0, 0, 1, 1], [], []>} : vector<8x128xf32>, vector<128x128xf32>, vector<8x128xf32> -> vector<8x128xf32>
    %83 = arith.index_cast %c2_i32 : i32 to index
    %c0_43 = arith.constant 0 : index
    %c0_44 = arith.constant 0 : index
    %84 = vector.load %arg3[%83, %c0_43, %c0_44] : memref<3x1x128xf32, #tpu.memory_space<vmem>>, vector<1x1x128xf32>
    %85 = vector.shape_cast %84 : vector<1x1x128xf32> to vector<1x128xf32>
    %86 = vector.broadcast %85 : vector<1x128xf32> to vector<8x128xf32>
    %87 = arith.addf %82, %86 : vector<8x128xf32>
    %cst_45 = arith.constant 0.000000e+00 : f32
    %88 = vector.broadcast %cst_45 : f32 to vector<8x128xf32>
    %89 = arith.maximumf %87, %88 : vector<8x128xf32>
    %90 = arith.index_cast %c2_i32 : i32 to index
    %c0_46 = arith.constant 0 : index
    %c0_47 = arith.constant 0 : index
    %91 = vector.load %arg4[%90, %c0_46, %c0_47] : memref<3x128x128xf32, #tpu.memory_space<vmem>>, vector<1x128x128xf32>
    %92 = vector.shape_cast %91 : vector<1x128x128xf32> to vector<128x128xf32>
    %cst_48 = arith.constant dense<0.000000e+00> : vector<8x128xf32>
    %93 = tpu.matmul %89, %92, %cst_48 {dimension_numbers = #tpu.dot_dimension_numbers<[1], [0], [0], [1], [0, 0, 1, 1], [], []>} : vector<8x128xf32>, vector<128x128xf32>, vector<8x128xf32> -> vector<8x128xf32>
    %94 = arith.index_cast %c2_i32 : i32 to index
    %c0_49 = arith.constant 0 : index
    %c0_50 = arith.constant 0 : index
    %95 = vector.load %arg5[%94, %c0_49, %c0_50] : memref<3x1x128xf32, #tpu.memory_space<vmem>>, vector<1x1x128xf32>
    %96 = vector.shape_cast %95 : vector<1x1x128xf32> to vector<1x128xf32>
    %97 = vector.broadcast %96 : vector<1x128xf32> to vector<8x128xf32>
    %98 = arith.addf %93, %97 : vector<8x128xf32>
    %cst_51 = arith.constant 0.000000e+00 : f32
    %99 = vector.broadcast %cst_51 : f32 to vector<8x128xf32>
    %100 = arith.maximumf %98, %99 : vector<8x128xf32>
    %101 = arith.index_cast %c2_i32 : i32 to index
    %c0_52 = arith.constant 0 : index
    %c0_53 = arith.constant 0 : index
    %102 = vector.load %arg6[%101, %c0_52, %c0_53] : memref<3x128x128xf32, #tpu.memory_space<vmem>>, vector<1x128x128xf32>
    %103 = vector.shape_cast %102 : vector<1x128x128xf32> to vector<128x128xf32>
    %cst_54 = arith.constant dense<0.000000e+00> : vector<8x128xf32>
    %104 = tpu.matmul %100, %103, %cst_54 {dimension_numbers = #tpu.dot_dimension_numbers<[1], [0], [0], [1], [0, 0, 1, 1], [], []>} : vector<8x128xf32>, vector<128x128xf32>, vector<8x128xf32> -> vector<8x128xf32>
    %105 = arith.index_cast %c2_i32 : i32 to index
    %c0_55 = arith.constant 0 : index
    %c0_56 = arith.constant 0 : index
    %106 = vector.load %arg7[%105, %c0_55, %c0_56] : memref<3x1x128xf32, #tpu.memory_space<vmem>>, vector<1x1x128xf32>
    %107 = vector.shape_cast %106 : vector<1x1x128xf32> to vector<1x128xf32>
    %108 = vector.broadcast %107 : vector<1x128xf32> to vector<8x128xf32>
    %109 = arith.addf %104, %108 : vector<8x128xf32>
    %cst_57 = arith.constant 0.000000e+00 : f32
    %110 = vector.broadcast %cst_57 : f32 to vector<8x128xf32>
    %111 = arith.maximumf %109, %110 : vector<8x128xf32>
    %112 = arith.minimumf %111, %78 : vector<8x128xf32>
    %113 = arith.index_cast %c2_i32 : i32 to index
    %c0_58 = arith.constant 0 : index
    %c0_59 = arith.constant 0 : index
    %114 = vector.load %arg8[%113, %c0_58, %c0_59] : memref<3x8x128xf32, #tpu.memory_space<vmem>>, vector<1x8x128xf32>
    %115 = vector.shape_cast %114 : vector<1x8x128xf32> to vector<8x128xf32>
    %116 = vector.shape_cast %112 : vector<8x128xf32> to vector<1x8x128xf32>
    tpu.vector_store %arg8[%113, %c0_58, %c0_59], %116 {strides = array<i32>} : memref<3x8x128xf32, #tpu.memory_space<vmem>>, vector<1x8x128xf32>,
    %117 = arith.subf %78, %112 : vector<8x128xf32>
    %c3_i32 = arith.constant 3 : i32
    return
  }
  func.func @transform_0(%arg0: i32) -> (i32, i32) {
    %c0_i32 = arith.constant 0 : i32
    %c0_i32_0 = arith.constant 0 : i32
    return %arg0, %c0_i32 : i32, i32
  }
  func.func @transform_1(%arg0: i32) -> (i32, i32, i32) {
    %c0_i32 = arith.constant 0 : i32
    %c0_i32_0 = arith.constant 0 : i32
    %c0_i32_1 = arith.constant 0 : i32
    %c0_i32_2 = arith.constant 0 : i32
    return %c0_i32, %c0_i32_0, %c0_i32_1 : i32, i32, i32
  }
  func.func @transform_2(%arg0: i32) -> (i32, i32, i32) {
    %c0_i32 = arith.constant 0 : i32
    %c0_i32_0 = arith.constant 0 : i32
    %c0_i32_1 = arith.constant 0 : i32
    %c0_i32_2 = arith.constant 0 : i32
    return %c0_i32, %c0_i32_0, %c0_i32_1 : i32, i32, i32
  }
  func.func @transform_3(%arg0: i32) -> (i32, i32, i32) {
    %c0_i32 = arith.constant 0 : i32
    %c0_i32_0 = arith.constant 0 : i32
    %c0_i32_1 = arith.constant 0 : i32
    %c0_i32_2 = arith.constant 0 : i32
    return %c0_i32, %c0_i32_0, %c0_i32_1 : i32, i32, i32
  }
  func.func @transform_4(%arg0: i32) -> (i32, i32, i32) {
    %c0_i32 = arith.constant 0 : i32
    %c0_i32_0 = arith.constant 0 : i32
    %c0_i32_1 = arith.constant 0 : i32
    %c0_i32_2 = arith.constant 0 : i32
    return %c0_i32, %c0_i32_0, %c0_i32_1 : i32, i32, i32
  }
  func.func @transform_5(%arg0: i32) -> (i32, i32, i32) {
    %c0_i32 = arith.constant 0 : i32
    %c0_i32_0 = arith.constant 0 : i32
    %c0_i32_1 = arith.constant 0 : i32
    %c0_i32_2 = arith.constant 0 : i32
    return %c0_i32, %c0_i32_0, %c0_i32_1 : i32, i32, i32
  }
  func.func @transform_6(%arg0: i32) -> (i32, i32, i32) {
    %c0_i32 = arith.constant 0 : i32
    %c0_i32_0 = arith.constant 0 : i32
    %c0_i32_1 = arith.constant 0 : i32
    %c0_i32_2 = arith.constant 0 : i32
    return %c0_i32, %c0_i32_0, %c0_i32_1 : i32, i32, i32
  }
  func.func @transform_7(%arg0: i32) -> (i32, i32, i32) {
    %c0_i32 = arith.constant 0 : i32
    %c0_i32_0 = arith.constant 0 : i32
    %c0_i32_1 = arith.constant 0 : i32
    return %c0_i32, %arg0, %c0_i32_0 : i32, i32, i32
  }
}

</mosaic_0001>

<llo_original>
// kernel: appliances_rnn_forward.1
$region0: #{appliances_rnn_forward.1}
  #allocation0 [shape = 'u32[]', space=smem, size = 0x4, offset = 0x4, fixed_abs, tag = 'smem constant byte address 0x4 - core index']
  #allocation1 [shape = 'u32[144,128]{1,0:T(1,128)}', space=vmem, size = 0x12000, scoped, tag = 'internal scratch']
  %s0 = inlined_call_operand.vmem [shape: f32[8,128], index: 0, kind: input, shape index: {}]
  %s1 = inlined_call_operand.hbm [shape: f32[3,128,128], index: 1, kind: input, shape index: {}]
  %s2 = inlined_call_operand.vmem [shape: f32[3,1,128], index: 2, kind: input, shape index: {}]
  %s3 = inlined_call_operand.hbm [shape: f32[3,128,128], index: 3, kind: input, shape index: {}]
  %s4 = inlined_call_operand.vmem [shape: f32[3,1,128], index: 4, kind: input, shape index: {}]
  %s5 = inlined_call_operand.hbm [shape: f32[3,128,128], index: 5, kind: input, shape index: {}]
  %s6 = inlined_call_operand.vmem [shape: f32[3,1,128], index: 6, kind: input, shape index: {}]
  %s7 = inlined_call_operand.vmem [shape: f32[3,8,128], index: 7, kind: output, shape index: {}]
  %s8 = sld [smem:[#allocation0]]
  $region50: #{appliances_rnn_forward.1} parent=0
    _
  %s10 = ssub.s32 1, %s8
  %s11 = scalar_select 0, %s10, %s8
  $region1: #{appliances_rnn_forward.1} parent=0
    #allocation2 [shape = 'u8[196608]{0}', space=vmem, size = 0x30000, scoped, tag = 'input window, operand 1, single buffered']
    #allocation3 [shape = 's32[1]{0}', space=sflag, size = 0x4, scoped, tag = 'scoped memory for appliances_rnn_forward.1']
    #allocation4 [shape = 'u8[196608]{0}', space=vmem, size = 0x30000, scoped, tag = 'input window, operand 3, single buffered']
    #allocation5 [shape = 's32[1]{0}', space=sflag, size = 0x4, scoped, tag = 'scoped memory for appliances_rnn_forward.1']
    #allocation6 [shape = 'u8[196608]{0}', space=vmem, size = 0x30000, scoped, tag = 'input window, operand 5, single buffered']
    %12 = vsyncpa [#allocation3], 0
    %13 = vsyncpa [#allocation5], 0
    // Predicated region
    $region2: #{appliances_rnn_forward.1} parent=1 // pred_check
      _
    $region3: #{appliances_rnn_forward.1} parent=1 // pred_check_branch
      %15 = sbr.rel (0) target = $region5
    $region4: #{appliances_rnn_forward.1} parent=1 // pred_region
      _
    $region5: #{appliances_rnn_forward.1} parent=1 // pred_fallthru
      _
    // Predicated region
    $region6: #{appliances_rnn_forward.1} parent=1 // pred_check
      _
    $region7: #{appliances_rnn_forward.1} parent=1 // pred_check_branch
      %17 = sbr.rel (0) target = $region9
    $region8: #{appliances_rnn_forward.1} parent=1 // pred_region
      %s19 = ssub.s32 6144, 6144
      %20 = vsyncadd [#allocation3], %s19
      %s21 = sshll.u32 [#allocation2], 4
      %s22 = int_to_ptr.vmem [resolvable:$true] %s21
      %27 = dma.hbm_to_vmem [thread:$0]  %s1, 6144, %s22, [#allocation3], 128, 128, 8
    $region9: #{appliances_rnn_forward.1} parent=1 // pred_fallthru
      _
    // Predicated region
    $region10: #{appliances_rnn_forward.1} parent=1 // pred_check
      _
    $region11: #{appliances_rnn_forward.1} parent=1 // pred_check_branch
      %29 = sbr.rel (0) target = $region13
    $region12: #{appliances_rnn_forward.1} parent=1 // pred_region
      _
    $region13: #{appliances_rnn_forward.1} parent=1 // pred_fallthru
      _
    // Predicated region
    $region14: #{appliances_rnn_forward.1} parent=1 // pred_check
      _
    $region15: #{appliances_rnn_forward.1} parent=1 // pred_check_branch
      %31 = sbr.rel (0) target = $region17
    $region16: #{appliances_rnn_forward.1} parent=1 // pred_region
      %s33 = ssub.s32 6144, 6144
      %34 = vsyncadd [#allocation5], %s33
      %s35 = sshll.u32 [#allocation4], 4
      %s36 = int_to_ptr.vmem [resolvable:$true] %s35
      %41 = dma.hbm_to_vmem [thread:$0]  %s3, 6144, %s36, [#allocation5], 128, 128, 8
    $region17: #{appliances_rnn_forward.1} parent=1 // pred_fallthru
      _
    // Predicated region
    $region18: #{appliances_rnn_forward.1} parent=1 // pred_check
      _
    $region19: #{appliances_rnn_forward.1} parent=1 // pred_check_branch
      %43 = sbr.rel (0) target = $region21
    $region20: #{appliances_rnn_forward.1} parent=1 // pred_region
      _
    $region21: #{appliances_rnn_forward.1} parent=1 // pred_fallthru
      _
    // Predicated region
    $region22: #{appliances_rnn_forward.1} parent=1 // pred_check
      _
    $region23: #{appliances_rnn_forward.1} parent=1 // pred_check_branch
      %45 = sbr.rel (0) target = $region25
    $region24: #{appliances_rnn_forward.1} parent=1 // pred_region
      %s47 = ssub.s32 6144, 6144
      %48 = vsyncadd [#allocation5], %s47
      %s49 = sshll.u32 [#allocation6], 4
      %s50 = int_to_ptr.vmem [resolvable:$true] %s49
      %55 = dma.hbm_to_vmem [thread:$0]  %s5, 6144, %s50, [#allocation5], 128, 128, 8
    $region25: #{appliances_rnn_forward.1} parent=1 // pred_fallthru
      _
    // Predicated region
    $region26: #{appliances_rnn_forward.1} parent=1 // pred_check
      _
    $region27: #{appliances_rnn_forward.1} parent=1 // pred_check_branch
      %57 = sbr.rel (0) target = $region29
    $region28: #{appliances_rnn_forward.1} parent=1 // pred_region
      _
    $region29: #{appliances_rnn_forward.1} parent=1 // pred_fallthru
      _
    // Predicated region
    $region30: #{appliances_rnn_forward.1} parent=1 // pred_check
      _
    $region31: #{appliances_rnn_forward.1} parent=1 // pred_check_branch
      %59 = sbr.rel (0) target = $region33
    $region32: #{appliances_rnn_forward.1} parent=1 // pred_region
      %60 = dma.done [#allocation3], 6144
    $region33: #{appliances_rnn_forward.1} parent=1 // pred_fallthru
      _
    // Predicated region
    $region34: #{appliances_rnn_forward.1} parent=1 // pred_check
      _
    $region35: #{appliances_rnn_forward.1} parent=1 // pred_check_branch
      %62 = sbr.rel (0) target = $region37
    $region36: #{appliances_rnn_forward.1} parent=1 // pred_region
      %63 = dma.done [#allocation5], 6144
    $region37: #{appliances_rnn_forward.1} parent=1 // pred_fallthru
      _
    // Predicated region
    $region38: #{appliances_rnn_forward.1} parent=1 // pred_check
      _
    $region39: #{appliances_rnn_forward.1} parent=1 // pred_check_branch
      %65 = sbr.rel (0) target = $region41
    $region40: #{appliances_rnn_forward.1} parent=1 // pred_region
      %66 = dma.done [#allocation5], 6144
    $region41: #{appliances_rnn_forward.1} parent=1 // pred_fallthru
      _
    %v67 = vld [vmem:[%s0] sm:$0xff]
    %v68 = vld [vmem:[#allocation2] sm:$0xff]
    %v69 = vld [vmem:[#allocation2 + $0x8] sm:$0xff]
    %v70 = vld [vmem:[#allocation2 + $0x10] sm:$0xff]
    %v71 = vld [vmem:[#allocation2 + $0x18] sm:$0xff]
    %v72 = vld [vmem:[#allocation2 + $0x20] sm:$0xff]
    %v73 = vld [vmem:[#allocation2 + $0x28] sm:$0xff]
    %v74 = vld [vmem:[#allocation2 + $0x30] sm:$0xff]
    %v75 = vld [vmem:[#allocation2 + $0x38] sm:$0xff]
    %v76 = vld [vmem:[#allocation2 + $0x40] sm:$0xff]
    %v77 = vld [vmem:[#allocation2 + $0x48] sm:$0xff]
    %v78 = vld [vmem:[#allocation2 + $0x50] sm:$0xff]
    %v79 = vld [vmem:[#allocation2 + $0x58] sm:$0xff]
    %v80 = vld [vmem:[#allocation2 + $0x60] sm:$0xff]
    %v81 = vld [vmem:[#allocation2 + $0x68] sm:$0xff]
    %v82 = vld [vmem:[#allocation2 + $0x70] sm:$0xff]
    %v83 = vld [vmem:[#allocation2 + $0x78] sm:$0xff]
    %v84 = vld [vmem:[%s2] sm:$0x1]
    %v86 = vlaneseq
    %v87 = vshrl.u32 %v86, 7
    %v88 = vsub.s32 0, %v87
    %v89 = vrot.slane %v84, %v88
    %91 = vmatprep.subr.mxu0 0.0
    %92 = vmatpush1.msra.mxu0 %v68
    %93 = vmatprep.subr.mxu0 0.0
    %94 = vmatpush1.msra.mxu0 %v69
    %95 = vmatprep.subr.mxu0 0.0
    %96 = vmatpush1.msra.mxu0 %v70
    %97 = vmatprep.subr.mxu0 0.0
    %98 = vmatpush1.msra.mxu0 %v71
    %99 = vmatprep.subr.mxu0 0.0
    %100 = vmatpush1.msra.mxu0 %v72
    %101 = vmatprep.subr.mxu0 0.0
    %102 = vmatpush1.msra.mxu0 %v73
    %103 = vmatprep.subr.mxu0 0.0
    %104 = vmatpush1.msra.mxu0 %v74
    %105 = vmatprep.subr.mxu0 0.0
    %106 = vmatpush1.msra.mxu0 %v75
    %107 = vmatprep.subr.mxu0 0.0
    %108 = vmatpush1.msra.mxu0 %v76
    %109 = vmatprep.subr.mxu0 0.0
    %110 = vmatpush1.msra.mxu0 %v77
    %111 = vmatprep.subr.mxu0 0.0
    %112 = vmatpush1.msra.mxu0 %v78
    %113 = vmatprep.subr.mxu0 0.0
    %114 = vmatpush1.msra.mxu0 %v79
    %115 = vmatprep.subr.mxu0 0.0
    %116 = vmatpush1.msra.mxu0 %v80
    %117 = vmatprep.subr.mxu0 0.0
    %118 = vmatpush1.msra.mxu0 %v81
    %119 = vmatprep.subr.mxu0 0.0
    %120 = vmatpush1.msra.mxu0 %v82
    %121 = vmatprep.subr.mxu0 0.0
    %122 = vmatpush1.msra.mxu0 %v83
    %123 = vmatprep.subr.mxu0 0.0
    %124 = vmatpush1.msra.mxu0 0.0
    %125 = vmatprep.subr.mxu0 0.0
    %126 = vmatpush1.msra.mxu0 0.0
    %127 = vmatprep.subr.mxu0 0.0
    %128 = vmatpush1.msra.mxu0 0.0
    %129 = vmatprep.subr.mxu0 0.0
    %130 = vmatpush1.msra.mxu0 0.0
    %131 = vmatprep.subr.mxu0 0.0
    %132 = vmatpush1.msra.mxu0 0.0
    %133 = vmatprep.subr.mxu0 0.0
    %134 = vmatpush1.msra.mxu0 0.0
    %135 = vmatprep.subr.mxu0 0.0
    %136 = vmatpush1.msra.mxu0 0.0
    %137 = vmatprep.subr.mxu0 0.0
    %138 = vmatpush1.msra.mxu0 0.0
    %139 = vmatprep.subr.mxu0 0.0
    %140 = vmatpush1.msra.mxu0 0.0
    %141 = vmatprep.subr.mxu0 0.0
    %142 = vmatpush1.msra.mxu0 0.0
    %143 = vmatprep.subr.mxu0 0.0
    %144 = vmatpush1.msra.mxu0 0.0
    %145 = vmatprep.subr.mxu0 0.0
    %146 = vmatpush1.msra.mxu0 0.0
    %147 = vmatprep.subr.mxu0 0.0
    %148 = vmatpush1.msra.mxu0 0.0
    %149 = vmatprep.subr.mxu0 0.0
    %150 = vmatpush1.msra.mxu0 0.0
    %151 = vmatprep.subr.mxu0 0.0
    %152 = vmatpush1.msra.mxu0 0.0
    %153 = vmatprep.subr.mxu0 0.0
    %154 = vmatpush1.msra.mxu0 0.0
    %155 = vmatprep.mubr.f32.mxu0 0.0
    %156 = vmatmul.mubr.f32.gmra.mrb[0].mxu0 %v67
    %v157 = vpop.f32.mrb[0].mxu0
    %v158 = vadd.f32 %v89, %v157
    %v159 = vpop.f32.mrb[0].mxu0
    %160 = vdwg.mxu0
    %v161 = vmax.f32 %v158, 0.0
    %v162 = vld [vmem:[#allocation4] sm:$0xff]
    %v163 = vld [vmem:[#allocation4 + $0x8] sm:$0xff]
    %v164 = vld [vmem:[#allocation4 + $0x10] sm:$0xff]
    %v165 = vld [vmem:[#allocation4 + $0x18] sm:$0xff]
    %v166 = vld [vmem:[#allocation4 + $0x20] sm:$0xff]
    %v167 = vld [vmem:[#allocation4 + $0x28] sm:$0xff]
    %v168 = vld [vmem:[#allocation4 + $0x30] sm:$0xff]
    %v169 = vld [vmem:[#allocation4 + $0x38] sm:$0xff]
    %v170 = vld [vmem:[#allocation4 + $0x40] sm:$0xff]
    %v171 = vld [vmem:[#allocation4 + $0x48] sm:$0xff]
    %v172 = vld [vmem:[#allocation4 + $0x50] sm:$0xff]
    %v173 = vld [vmem:[#allocation4 + $0x58] sm:$0xff]
    %v174 = vld [vmem:[#allocation4 + $0x60] sm:$0xff]
    %v175 = vld [vmem:[#allocation4 + $0x68] sm:$0xff]
    %v176 = vld [vmem:[#allocation4 + $0x70] sm:$0xff]
    %v177 = vld [vmem:[#allocation4 + $0x78] sm:$0xff]
    %v178 = vld [vmem:[%s4] sm:$0x1]
    %v180 = vlaneseq
    %v181 = vshrl.u32 %v180, 7
    %v182 = vsub.s32 0, %v181
    %v183 = vrot.slane %v178, %v182
    %185 = vmatprep.subr.mxu0 0.0
    %186 = vmatpush1.msra.mxu0 %v162
    %187 = vmatprep.subr.mxu0 0.0
    %188 = vmatpush1.msra.mxu0 %v163
    %189 = vmatprep.subr.mxu0 0.0
    %190 = vmatpush1.msra.mxu0 %v164
    %191 = vmatprep.subr.mxu0 0.0
    %192 = vmatpush1.msra.mxu0 %v165
    %193 = vmatprep.subr.mxu0 0.0
    %194 = vmatpush1.msra.mxu0 %v166
    %195 = vmatprep.subr.mxu0 0.0
    %196 = vmatpush1.msra.mxu0 %v167
    %197 = vmatprep.subr.mxu0 0.0
    %198 = vmatpush1.msra.mxu0 %v168
    %199 = vmatprep.subr.mxu0 0.0
    %200 = vmatpush1.msra.mxu0 %v169
    %201 = vmatprep.subr.mxu0 0.0
    %202 = vmatpush1.msra.mxu0 %v170
    %203 = vmatprep.subr.mxu0 0.0
    %204 = vmatpush1.msra.mxu0 %v171
    %205 = vmatprep.subr.mxu0 0.0
    %206 = vmatpush1.msra.mxu0 %v172
    %207 = vmatprep.subr.mxu0 0.0
    %208 = vmatpush1.msra.mxu0 %v173
    %209 = vmatprep.subr.mxu0 0.0
    %210 = vmatpush1.msra.mxu0 %v174
    %211 = vmatprep.subr.mxu0 0.0
    %212 = vmatpush1.msra.mxu0 %v175
    %213 = vmatprep.subr.mxu0 0.0
    %214 = vmatpush1.msra.mxu0 %v176
    %215 = vmatprep.subr.mxu0 0.0
    %216 = vmatpush1.msra.mxu0 %v177
    %217 = vmatprep.subr.mxu0 0.0
    %218 = vmatpush1.msra.mxu0 0.0
    %219 = vmatprep.subr.mxu0 0.0
    %220 = vmatpush1.msra.mxu0 0.0
    %221 = vmatprep.subr.mxu0 0.0
    %222 = vmatpush1.msra.mxu0 0.0
    %223 = vmatprep.subr.mxu0 0.0
    %224 = vmatpush1.msra.mxu0 0.0
    %225 = vmatprep.subr.mxu0 0.0
    %226 = vmatpush1.msra.mxu0 0.0
    %227 = vmatprep.subr.mxu0 0.0
    %228 = vmatpush1.msra.mxu0 0.0
    %229 = vmatprep.subr.mxu0 0.0
    %230 = vmatpush1.msra.mxu0 0.0
    %231 = vmatprep.subr.mxu0 0.0
    %232 = vmatpush1.msra.mxu0 0.0
    %233 = vmatprep.subr.mxu0 0.0
    %234 = vmatpush1.msra.mxu0 0.0
    %235 = vmatprep.subr.mxu0 0.0
    %236 = vmatpush1.msra.mxu0 0.0
    %237 = vmatprep.subr.mxu0 0.0
    %238 = vmatpush1.msra.mxu0 0.0
    %239 = vmatprep.subr.mxu0 0.0
    %240 = vmatpush1.msra.mxu0 0.0
    %241 = vmatprep.subr.mxu0 0.0
    %242 = vmatpush1.msra.mxu0 0.0
    %243 = vmatprep.subr.mxu0 0.0
    %244 = vmatpush1.msra.mxu0 0.0
    %245 = vmatprep.subr.mxu0 0.0
    %246 = vmatpush1.msra.mxu0 0.0
    %247 = vmatprep.subr.mxu0 0.0
    %248 = vmatpush1.msra.mxu0 0.0
    %249 = vmatprep.mubr.f32.mxu0 0.0
    %250 = vmatmul.mubr.f32.gmra.mrb[0].mxu0 %v161
    %v251 = vpop.f32.mrb[0].mxu0
    %v252 = vadd.f32 %v183, %v251
    %v253 = vpop.f32.mrb[0].mxu0
    %254 = vdwg.mxu0
    %v255 = vmax.f32 %v252, 0.0
    %v256 = vld [vmem:[#allocation6] sm:$0xff]
    %v257 = vld [vmem:[#allocation6 + $0x8] sm:$0xff]
    %v258 = vld [vmem:[#allocation6 + $0x10] sm:$0xff]
    %v259 = vld [vmem:[#allocation6 + $0x18] sm:$0xff]
    %v260 = vld [vmem:[#allocation6 + $0x20] sm:$0xff]
    %v261 = vld [vmem:[#allocation6 + $0x28] sm:$0xff]
    %v262 = vld [vmem:[#allocation6 + $0x30] sm:$0xff]
    %v263 = vld [vmem:[#allocation6 + $0x38] sm:$0xff]
    %v264 = vld [vmem:[#allocation6 + $0x40] sm:$0xff]
    %v265 = vld [vmem:[#allocation6 + $0x48] sm:$0xff]
    %v266 = vld [vmem:[#allocation6 + $0x50] sm:$0xff]
    %v267 = vld [vmem:[#allocation6 + $0x58] sm:$0xff]
    %v268 = vld [vmem:[#allocation6 + $0x60] sm:$0xff]
    %v269 = vld [vmem:[#allocation6 + $0x68] sm:$0xff]
    %v270 = vld [vmem:[#allocation6 + $0x70] sm:$0xff]
    %v271 = vld [vmem:[#allocation6 + $0x78] sm:$0xff]
    %v272 = vld [vmem:[%s6] sm:$0x1]
    %v274 = vlaneseq
    %v275 = vshrl.u32 %v274, 7
    %v276 = vsub.s32 0, %v275
    %v277 = vrot.slane %v272, %v276
    %279 = vmatprep.subr.mxu0 0.0
    %280 = vmatpush1.msra.mxu0 %v256
    %281 = vmatprep.subr.mxu0 0.0
    %282 = vmatpush1.msra.mxu0 %v257
    %283 = vmatprep.subr.mxu0 0.0
    %284 = vmatpush1.msra.mxu0 %v258
    %285 = vmatprep.subr.mxu0 0.0
    %286 = vmatpush1.msra.mxu0 %v259
    %287 = vmatprep.subr.mxu0 0.0
    %288 = vmatpush1.msra.mxu0 %v260
    %289 = vmatprep.subr.mxu0 0.0
    %290 = vmatpush1.msra.mxu0 %v261
    %291 = vmatprep.subr.mxu0 0.0
    %292 = vmatpush1.msra.mxu0 %v262
    %293 = vmatprep.subr.mxu0 0.0
    %294 = vmatpush1.msra.mxu0 %v263
    %295 = vmatprep.subr.mxu0 0.0
    %296 = vmatpush1.msra.mxu0 %v264
    %297 = vmatprep.subr.mxu0 0.0
    %298 = vmatpush1.msra.mxu0 %v265
    %299 = vmatprep.subr.mxu0 0.0
    %300 = vmatpush1.msra.mxu0 %v266
    %301 = vmatprep.subr.mxu0 0.0
    %302 = vmatpush1.msra.mxu0 %v267
    %303 = vmatprep.subr.mxu0 0.0
    %304 = vmatpush1.msra.mxu0 %v268
    %305 = vmatprep.subr.mxu0 0.0
    %306 = vmatpush1.msra.mxu0 %v269
    %307 = vmatprep.subr.mxu0 0.0
    %308 = vmatpush1.msra.mxu0 %v270
    %309 = vmatprep.subr.mxu0 0.0
    %310 = vmatpush1.msra.mxu0 %v271
    %311 = vmatprep.subr.mxu0 0.0
    %312 = vmatpush1.msra.mxu0 0.0
    %313 = vmatprep.subr.mxu0 0.0
    %314 = vmatpush1.msra.mxu0 0.0
    %315 = vmatprep.subr.mxu0 0.0
    %316 = vmatpush1.msra.mxu0 0.0
    %317 = vmatprep.subr.mxu0 0.0
    %318 = vmatpush1.msra.mxu0 0.0
    %319 = vmatprep.subr.mxu0 0.0
    %320 = vmatpush1.msra.mxu0 0.0
    %321 = vmatprep.subr.mxu0 0.0
    %322 = vmatpush1.msra.mxu0 0.0
    %323 = vmatprep.subr.mxu0 0.0
    %324 = vmatpush1.msra.mxu0 0.0
    %325 = vmatprep.subr.mxu0 0.0
    %326 = vmatpush1.msra.mxu0 0.0
    %327 = vmatprep.subr.mxu0 0.0
    %328 = vmatpush1.msra.mxu0 0.0
    %329 = vmatprep.subr.mxu0 0.0
    %330 = vmatpush1.msra.mxu0 0.0
    %331 = vmatprep.subr.mxu0 0.0
    %332 = vmatpush1.msra.mxu0 0.0
    %333 = vmatprep.subr.mxu0 0.0
    %334 = vmatpush1.msra.mxu0 0.0
    %335 = vmatprep.subr.mxu0 0.0
    %336 = vmatpush1.msra.mxu0 0.0
    %337 = vmatprep.subr.mxu0 0.0
    %338 = vmatpush1.msra.mxu0 0.0
    %339 = vmatprep.subr.mxu0 0.0
    %340 = vmatpush1.msra.mxu0 0.0
    %341 = vmatprep.subr.mxu0 0.0
    %342 = vmatpush1.msra.mxu0 0.0
    %343 = vmatprep.mubr.f32.mxu0 0.0
    %344 = vmatmul.mubr.f32.gmra.mrb[0].mxu0 %v255
    %v345 = vpop.f32.mrb[0].mxu0
    %v346 = vadd.f32 %v277, %v345
    %v347 = vpop.f32.mrb[0].mxu0
    %348 = vdwg.mxu0
    %v349 = vmax.f32 %v346, 0.0
    %v350 = vmin.f32 %v349, %v67
    %351 = vst [vmem:[%s7] sm:$0xff] %v350
    %v352 = vsub.f32 %v67, %v350
    %s353 = scalar_lea.vmem [#allocation2], 128
    %v354 = vld [vmem:[%s353] sm:$0xff]
    %v355 = vld [vmem:[%s353 + $0x8] sm:$0xff]
    %v356 = vld [vmem:[%s353 + $0x10] sm:$0xff]
    %v357 = vld [vmem:[%s353 + $0x18] sm:$0xff]
    %v358 = vld [vmem:[%s353 + $0x20] sm:$0xff]
    %v359 = vld [vmem:[%s353 + $0x28] sm:$0xff]
    %v360 = vld [vmem:[%s353 + $0x30] sm:$0xff]
    %v361 = vld [vmem:[%s353 + $0x38] sm:$0xff]
    %v362 = vld [vmem:[%s353 + $0x40] sm:$0xff]
    %v363 = vld [vmem:[%s353 + $0x48] sm:$0xff]
    %v364 = vld [vmem:[%s353 + $0x50] sm:$0xff]
    %v365 = vld [vmem:[%s353 + $0x58] sm:$0xff]
    %v366 = vld [vmem:[%s353 + $0x60] sm:$0xff]
    %v367 = vld [vmem:[%s353 + $0x68] sm:$0xff]
    %v368 = vld [vmem:[%s353 + $0x70] sm:$0xff]
    %v369 = vld [vmem:[%s353 + $0x78] sm:$0xff]
    %s370 = scalar_lea.vmem %s2, 1
    %v371 = vld [vmem:[%s370] sm:$0x1]
    %v373 = vlaneseq
    %v374 = vshrl.u32 %v373, 7
    %v375 = vsub.s32 0, %v374
    %v376 = vrot.slane %v371, %v375
    %378 = vmatprep.subr.mxu0 0.0
    %379 = vmatpush1.msra.mxu0 %v354
    %380 = vmatprep.subr.mxu0 0.0
    %381 = vmatpush1.msra.mxu0 %v355
    %382 = vmatprep.subr.mxu0 0.0
    %383 = vmatpush1.msra.mxu0 %v356
    %384 = vmatprep.subr.mxu0 0.0
    %385 = vmatpush1.msra.mxu0 %v357
    %386 = vmatprep.subr.mxu0 0.0
    %387 = vmatpush1.msra.mxu0 %v358
    %388 = vmatprep.subr.mxu0 0.0
    %389 = vmatpush1.msra.mxu0 %v359
    %390 = vmatprep.subr.mxu0 0.0
    %391 = vmatpush1.msra.mxu0 %v360
    %392 = vmatprep.subr.mxu0 0.0
    %393 = vmatpush1.msra.mxu0 %v361
    %394 = vmatprep.subr.mxu0 0.0
    %395 = vmatpush1.msra.mxu0 %v362
    %396 = vmatprep.subr.mxu0 0.0
    %397 = vmatpush1.msra.mxu0 %v363
    %398 = vmatprep.subr.mxu0 0.0
    %399 = vmatpush1.msra.mxu0 %v364
    %400 = vmatprep.subr.mxu0 0.0
    %401 = vmatpush1.msra.mxu0 %v365
    %402 = vmatprep.subr.mxu0 0.0
    %403 = vmatpush1.msra.mxu0 %v366
    %404 = vmatprep.subr.mxu0 0.0
    %405 = vmatpush1.msra.mxu0 %v367
    %406 = vmatprep.subr.mxu0 0.0
    %407 = vmatpush1.msra.mxu0 %v368
    %408 = vmatprep.subr.mxu0 0.0
    %409 = vmatpush1.msra.mxu0 %v369
    %410 = vmatprep.subr.mxu0 0.0
    %411 = vmatpush1.msra.mxu0 0.0
    %412 = vmatprep.subr.mxu0 0.0
    %413 = vmatpush1.msra.mxu0 0.0
    %414 = vmatprep.subr.mxu0 0.0
    %415 = vmatpush1.msra.mxu0 0.0
    %416 = vmatprep.subr.mxu0 0.0
    %417 = vmatpush1.msra.mxu0 0.0
    %418 = vmatprep.subr.mxu0 0.0
    %419 = vmatpush1.msra.mxu0 0.0
    %420 = vmatprep.subr.mxu0 0.0
    %421 = vmatpush1.msra.mxu0 0.0
    %422 = vmatprep.subr.mxu0 0.0
    %423 = vmatpush1.msra.mxu0 0.0
    %424 = vmatprep.subr.mxu0 0.0
    %425 = vmatpush1.msra.mxu0 0.0
    %426 = vmatprep.subr.mxu0 0.0
    %427 = vmatpush1.msra.mxu0 0.0
    %428 = vmatprep.subr.mxu0 0.0
    %429 = vmatpush1.msra.mxu0 0.0
    %430 = vmatprep.subr.mxu0 0.0
    %431 = vmatpush1.msra.mxu0 0.0
    %432 = vmatprep.subr.mxu0 0.0
    %433 = vmatpush1.msra.mxu0 0.0
    %434 = vmatprep.subr.mxu0 0.0
    %435 = vmatpush1.msra.mxu0 0.0
    %436 = vmatprep.subr.mxu0 0.0
    %437 = vmatpush1.msra.mxu0 0.0
    %438 = vmatprep.subr.mxu0 0.0
    %439 = vmatpush1.msra.mxu0 0.0
    %440 = vmatprep.subr.mxu0 0.0
    %441 = vmatpush1.msra.mxu0 0.0
    %442 = vmatprep.mubr.f32.mxu0 0.0
    %443 = vmatmul.mubr.f32.gmra.mrb[0].mxu0 %v352
    %v444 = vpop.f32.mrb[0].mxu0
    %v445 = vadd.f32 %v376, %v444
    %v446 = vpop.f32.mrb[0].mxu0
    %447 = vdwg.mxu0
    %v448 = vmax.f32 %v445, 0.0
    %s449 = scalar_lea.vmem [#allocation4], 128
    %v450 = vld [vmem:[%s449] sm:$0xff]
    %v451 = vld [vmem:[%s449 + $0x8] sm:$0xff]
    %v452 = vld [vmem:[%s449 + $0x10] sm:$0xff]
    %v453 = vld [vmem:[%s449 + $0x18] sm:$0xff]
    %v454 = vld [vmem:[%s449 + $0x20] sm:$0xff]
    %v455 = vld [vmem:[%s449 + $0x28] sm:$0xff]
    %v456 = vld [vmem:[%s449 + $0x30] sm:$0xff]
    %v457 = vld [vmem:[%s449 + $0x38] sm:$0xff]
    %v458 = vld [vmem:[%s449 + $0x40] sm:$0xff]
    %v459 = vld [vmem:[%s449 + $0x48] sm:$0xff]
    %v460 = vld [vmem:[%s449 + $0x50] sm:$0xff]
    %v461 = vld [vmem:[%s449 + $0x58] sm:$0xff]
    %v462 = vld [vmem:[%s449 + $0x60] sm:$0xff]
    %v463 = vld [vmem:[%s449 + $0x68] sm:$0xff]
    %v464 = vld [vmem:[%s449 + $0x70] sm:$0xff]
    %v465 = vld [vmem:[%s449 + $0x78] sm:$0xff]
    %s466 = scalar_lea.vmem %s4, 1
    %v467 = vld [vmem:[%s466] sm:$0x1]
    %v469 = vlaneseq
    %v470 = vshrl.u32 %v469, 7
    %v471 = vsub.s32 0, %v470
    %v472 = vrot.slane %v467, %v471
    %474 = vmatprep.subr.mxu0 0.0
    %475 = vmatpush1.msra.mxu0 %v450
    %476 = vmatprep.subr.mxu0 0.0
    %477 = vmatpush1.msra.mxu0 %v451
    %478 = vmatprep.subr.mxu0 0.0
    %479 = vmatpush1.msra.mxu0 %v452
    %480 = vmatprep.subr.mxu0 0.0
    %481 = vmatpush1.msra.mxu0 %v453
    %482 = vmatprep.subr.mxu0 0.0
    %483 = vmatpush1.msra.mxu0 %v454
    %484 = vmatprep.subr.mxu0 0.0
    %485 = vmatpush1.msra.mxu0 %v455
    %486 = vmatprep.subr.mxu0 0.0
    %487 = vmatpush1.msra.mxu0 %v456
    %488 = vmatprep.subr.mxu0 0.0
    %489 = vmatpush1.msra.mxu0 %v457
    %490 = vmatprep.subr.mxu0 0.0
    %491 = vmatpush1.msra.mxu0 %v458
    %492 = vmatprep.subr.mxu0 0.0
    %493 = vmatpush1.msra.mxu0 %v459
    %494 = vmatprep.subr.mxu0 0.0
    %495 = vmatpush1.msra.mxu0 %v460
    %496 = vmatprep.subr.mxu0 0.0
    %497 = vmatpush1.msra.mxu0 %v461
    %498 = vmatprep.subr.mxu0 0.0
    %499 = vmatpush1.msra.mxu0 %v462
    %500 = vmatprep.subr.mxu0 0.0
    %501 = vmatpush1.msra.mxu0 %v463
    %502 = vmatprep.subr.mxu0 0.0
    %503 = vmatpush1.msra.mxu0 %v464
    %504 = vmatprep.subr.mxu0 0.0
    %505 = vmatpush1.msra.mxu0 %v465
    %506 = vmatprep.subr.mxu0 0.0
    %507 = vmatpush1.msra.mxu0 0.0
    %508 = vmatprep.subr.mxu0 0.0
    %509 = vmatpush1.msra.mxu0 0.0
    %510 = vmatprep.subr.mxu0 0.0
    %511 = vmatpush1.msra.mxu0 0.0
    %512 = vmatprep.subr.mxu0 0.0
    %513 = vmatpush1.msra.mxu0 0.0
    %514 = vmatprep.subr.mxu0 0.0
    %515 = vmatpush1.msra.mxu0 0.0
    %516 = vmatprep.subr.mxu0 0.0
    %517 = vmatpush1.msra.mxu0 0.0
    %518 = vmatprep.subr.mxu0 0.0
    %519 = vmatpush1.msra.mxu0 0.0
    %520 = vmatprep.subr.mxu0 0.0
    %521 = vmatpush1.msra.mxu0 0.0
    %522 = vmatprep.subr.mxu0 0.0
    %523 = vmatpush1.msra.mxu0 0.0
    %524 = vmatprep.subr.mxu0 0.0
    %525 = vmatpush1.msra.mxu0 0.0
    %526 = vmatprep.subr.mxu0 0.0
    %527 = vmatpush1.msra.mxu0 0.0
    %528 = vmatprep.subr.mxu0 0.0
    %529 = vmatpush1.msra.mxu0 0.0
    %530 = vmatprep.subr.mxu0 0.0
    %531 = vmatpush1.msra.mxu0 0.0
    %532 = vmatprep.subr.mxu0 0.0
    %533 = vmatpush1.msra.mxu0 0.0
    %534 = vmatprep.subr.mxu0 0.0
    %535 = vmatpush1.msra.mxu0 0.0
    %536 = vmatprep.subr.mxu0 0.0
    %537 = vmatpush1.msra.mxu0 0.0
    %538 = vmatprep.mubr.f32.mxu0 0.0
    %539 = vmatmul.mubr.f32.gmra.mrb[0].mxu0 %v448
    %v540 = vpop.f32.mrb[0].mxu0
    %v541 = vadd.f32 %v472, %v540
    %v542 = vpop.f32.mrb[0].mxu0
    %543 = vdwg.mxu0
    %v544 = vmax.f32 %v541, 0.0
    %s545 = scalar_lea.vmem [#allocation6], 128
    %v546 = vld [vmem:[%s545] sm:$0xff]
    %v547 = vld [vmem:[%s545 + $0x8] sm:$0xff]
    %v548 = vld [vmem:[%s545 + $0x10] sm:$0xff]
    %v549 = vld [vmem:[%s545 + $0x18] sm:$0xff]
    %v550 = vld [vmem:[%s545 + $0x20] sm:$0xff]
    %v551 = vld [vmem:[%s545 + $0x28] sm:$0xff]
    %v552 = vld [vmem:[%s545 + $0x30] sm:$0xff]
    %v553 = vld [vmem:[%s545 + $0x38] sm:$0xff]
    %v554 = vld [vmem:[%s545 + $0x40] sm:$0xff]
    %v555 = vld [vmem:[%s545 + $0x48] sm:$0xff]
    %v556 = vld [vmem:[%s545 + $0x50] sm:$0xff]
    %v557 = vld [vmem:[%s545 + $0x58] sm:$0xff]
    %v558 = vld [vmem:[%s545 + $0x60] sm:$0xff]
    %v559 = vld [vmem:[%s545 + $0x68] sm:$0xff]
    %v560 = vld [vmem:[%s545 + $0x70] sm:$0xff]
    %v561 = vld [vmem:[%s545 + $0x78] sm:$0xff]
    %s562 = scalar_lea.vmem %s6, 1
    %v563 = vld [vmem:[%s562] sm:$0x1]
    %v565 = vlaneseq
    %v566 = vshrl.u32 %v565, 7
    %v567 = vsub.s32 0, %v566
    %v568 = vrot.slane %v563, %v567
    %570 = vmatprep.subr.mxu0 0.0
    %571 = vmatpush1.msra.mxu0 %v546
    %572 = vmatprep.subr.mxu0 0.0
    %573 = vmatpush1.msra.mxu0 %v547
    %574 = vmatprep.subr.mxu0 0.0
    %575 = vmatpush1.msra.mxu0 %v548
    %576 = vmatprep.subr.mxu0 0.0
    %577 = vmatpush1.msra.mxu0 %v549
    %578 = vmatprep.subr.mxu0 0.0
    %579 = vmatpush1.msra.mxu0 %v550
    %580 = vmatprep.subr.mxu0 0.0
    %581 = vmatpush1.msra.mxu0 %v551
    %582 = vmatprep.subr.mxu0 0.0
    %583 = vmatpush1.msra.mxu0 %v552
    %584 = vmatprep.subr.mxu0 0.0
    %585 = vmatpush1.msra.mxu0 %v553
    %586 = vmatprep.subr.mxu0 0.0
    %587 = vmatpush1.msra.mxu0 %v554
    %588 = vmatprep.subr.mxu0 0.0
    %589 = vmatpush1.msra.mxu0 %v555
    %590 = vmatprep.subr.mxu0 0.0
    %591 = vmatpush1.msra.mxu0 %v556
    %592 = vmatprep.subr.mxu0 0.0
    %593 = vmatpush1.msra.mxu0 %v557
    %594 = vmatprep.subr.mxu0 0.0
    %595 = vmatpush1.msra.mxu0 %v558
    %596 = vmatprep.subr.mxu0 0.0
    %597 = vmatpush1.msra.mxu0 %v559
    %598 = vmatprep.subr.mxu0 0.0
    %599 = vmatpush1.msra.mxu0 %v560
    %600 = vmatprep.subr.mxu0 0.0
    %601 = vmatpush1.msra.mxu0 %v561
    %602 = vmatprep.subr.mxu0 0.0
    %603 = vmatpush1.msra.mxu0 0.0
    %604 = vmatprep.subr.mxu0 0.0
    %605 = vmatpush1.msra.mxu0 0.0
    %606 = vmatprep.subr.mxu0 0.0
    %607 = vmatpush1.msra.mxu0 0.0
    %608 = vmatprep.subr.mxu0 0.0
    %609 = vmatpush1.msra.mxu0 0.0
    %610 = vmatprep.subr.mxu0 0.0
    %611 = vmatpush1.msra.mxu0 0.0
    %612 = vmatprep.subr.mxu0 0.0
    %613 = vmatpush1.msra.mxu0 0.0
    %614 = vmatprep.subr.mxu0 0.0
    %615 = vmatpush1.msra.mxu0 0.0
    %616 = vmatprep.subr.mxu0 0.0
    %617 = vmatpush1.msra.mxu0 0.0
    %618 = vmatprep.subr.mxu0 0.0
    %619 = vmatpush1.msra.mxu0 0.0
    %620 = vmatprep.subr.mxu0 0.0
    %621 = vmatpush1.msra.mxu0 0.0
    %622 = vmatprep.subr.mxu0 0.0
    %623 = vmatpush1.msra.mxu0 0.0
    %624 = vmatprep.subr.mxu0 0.0
    %625 = vmatpush1.msra.mxu0 0.0
    %626 = vmatprep.subr.mxu0 0.0
    %627 = vmatpush1.msra.mxu0 0.0
    %628 = vmatprep.subr.mxu0 0.0
    %629 = vmatpush1.msra.mxu0 0.0
    %630 = vmatprep.subr.mxu0 0.0
    %631 = vmatpush1.msra.mxu0 0.0
    %632 = vmatprep.subr.mxu0 0.0
    %633 = vmatpush1.msra.mxu0 0.0
    %634 = vmatprep.mubr.f32.mxu0 0.0
    %635 = vmatmul.mubr.f32.gmra.mrb[0].mxu0 %v544
    %v636 = vpop.f32.mrb[0].mxu0
    %v637 = vadd.f32 %v568, %v636
    %v638 = vpop.f32.mrb[0].mxu0
    %639 = vdwg.mxu0
    %v640 = vmax.f32 %v637, 0.0
    %v641 = vmin.f32 %v640, %v352
    %s642 = scalar_lea.vmem %s7, 8
    %643 = vst [vmem:[%s642] sm:$0xff] %v641
    %v644 = vsub.f32 %v352, %v641
    %s645 = scalar_lea.vmem [#allocation2], 256
    %v646 = vld [vmem:[%s645] sm:$0xff]
    %v647 = vld [vmem:[%s645 + $0x8] sm:$0xff]
    %v648 = vld [vmem:[%s645 + $0x10] sm:$0xff]
    %v649 = vld [vmem:[%s645 + $0x18] sm:$0xff]
    %v650 = vld [vmem:[%s645 + $0x20] sm:$0xff]
    %v651 = vld [vmem:[%s645 + $0x28] sm:$0xff]
    %v652 = vld [vmem:[%s645 + $0x30] sm:$0xff]
    %v653 = vld [vmem:[%s645 + $0x38] sm:$0xff]
    %v654 = vld [vmem:[%s645 + $0x40] sm:$0xff]
    %v655 = vld [vmem:[%s645 + $0x48] sm:$0xff]
    %v656 = vld [vmem:[%s645 + $0x50] sm:$0xff]
    %v657 = vld [vmem:[%s645 + $0x58] sm:$0xff]
    %v658 = vld [vmem:[%s645 + $0x60] sm:$0xff]
    %v659 = vld [vmem:[%s645 + $0x68] sm:$0xff]
    %v660 = vld [vmem:[%s645 + $0x70] sm:$0xff]
    %v661 = vld [vmem:[%s645 + $0x78] sm:$0xff]
    %s662 = scalar_lea.vmem %s2, 2
    %v663 = vld [vmem:[%s662] sm:$0x1]
    %v665 = vlaneseq
    %v666 = vshrl.u32 %v665, 7
    %v667 = vsub.s32 0, %v666
    %v668 = vrot.slane %v663, %v667
    %670 = vmatprep.subr.mxu0 0.0
    %671 = vmatpush1.msra.mxu0 %v646
    %672 = vmatprep.subr.mxu0 0.0
    %673 = vmatpush1.msra.mxu0 %v647
    %674 = vmatprep.subr.mxu0 0.0
    %675 = vmatpush1.msra.mxu0 %v648
    %676 = vmatprep.subr.mxu0 0.0
    %677 = vmatpush1.msra.mxu0 %v649
    %678 = vmatprep.subr.mxu0 0.0
    %679 = vmatpush1.msra.mxu0 %v650
    %680 = vmatprep.subr.mxu0 0.0
    %681 = vmatpush1.msra.mxu0 %v651
    %682 = vmatprep.subr.mxu0 0.0
    %683 = vmatpush1.msra.mxu0 %v652
    %684 = vmatprep.subr.mxu0 0.0
    %685 = vmatpush1.msra.mxu0 %v653
    %686 = vmatprep.subr.mxu0 0.0
    %687 = vmatpush1.msra.mxu0 %v654
    %688 = vmatprep.subr.mxu0 0.0
    %689 = vmatpush1.msra.mxu0 %v655
    %690 = vmatprep.subr.mxu0 0.0
    %691 = vmatpush1.msra.mxu0 %v656
    %692 = vmatprep.subr.mxu0 0.0
    %693 = vmatpush1.msra.mxu0 %v657
    %694 = vmatprep.subr.mxu0 0.0
    %695 = vmatpush1.msra.mxu0 %v658
    %696 = vmatprep.subr.mxu0 0.0
    %697 = vmatpush1.msra.mxu0 %v659
    %698 = vmatprep.subr.mxu0 0.0
    %699 = vmatpush1.msra.mxu0 %v660
    %700 = vmatprep.subr.mxu0 0.0
    %701 = vmatpush1.msra.mxu0 %v661
    %702 = vmatprep.subr.mxu0 0.0
    %703 = vmatpush1.msra.mxu0 0.0
    %704 = vmatprep.subr.mxu0 0.0
    %705 = vmatpush1.msra.mxu0 0.0
    %706 = vmatprep.subr.mxu0 0.0
    %707 = vmatpush1.msra.mxu0 0.0
    %708 = vmatprep.subr.mxu0 0.0
    %709 = vmatpush1.msra.mxu0 0.0
    %710 = vmatprep.subr.mxu0 0.0
    %711 = vmatpush1.msra.mxu0 0.0
    %712 = vmatprep.subr.mxu0 0.0
    %713 = vmatpush1.msra.mxu0 0.0
    %714 = vmatprep.subr.mxu0 0.0
    %715 = vmatpush1.msra.mxu0 0.0
    %716 = vmatprep.subr.mxu0 0.0
    %717 = vmatpush1.msra.mxu0 0.0
    %718 = vmatprep.subr.mxu0 0.0
    %719 = vmatpush1.msra.mxu0 0.0
    %720 = vmatprep.subr.mxu0 0.0
    %721 = vmatpush1.msra.mxu0 0.0
    %722 = vmatprep.subr.mxu0 0.0
    %723 = vmatpush1.msra.mxu0 0.0
    %724 = vmatprep.subr.mxu0 0.0
    %725 = vmatpush1.msra.mxu0 0.0
    %726 = vmatprep.subr.mxu0 0.0
    %727 = vmatpush1.msra.mxu0 0.0
    %728 = vmatprep.subr.mxu0 0.0
    %729 = vmatpush1.msra.mxu0 0.0
    %730 = vmatprep.subr.mxu0 0.0
    %731 = vmatpush1.msra.mxu0 0.0
    %732 = vmatprep.subr.mxu0 0.0
    %733 = vmatpush1.msra.mxu0 0.0
    %734 = vmatprep.mubr.f32.mxu0 0.0
    %735 = vmatmul.mubr.f32.gmra.mrb[0].mxu0 %v644
    %v736 = vpop.f32.mrb[0].mxu0
    %v737 = vadd.f32 %v668, %v736
    %v738 = vpop.f32.mrb[0].mxu0
    %739 = vdwg.mxu0
    %v740 = vmax.f32 %v737, 0.0
    %s741 = scalar_lea.vmem [#allocation4], 256
    %v742 = vld [vmem:[%s741] sm:$0xff]
    %v743 = vld [vmem:[%s741 + $0x8] sm:$0xff]
    %v744 = vld [vmem:[%s741 + $0x10] sm:$0xff]
    %v745 = vld [vmem:[%s741 + $0x18] sm:$0xff]
    %v746 = vld [vmem:[%s741 + $0x20] sm:$0xff]
    %v747 = vld [vmem:[%s741 + $0x28] sm:$0xff]
    %v748 = vld [vmem:[%s741 + $0x30] sm:$0xff]
    %v749 = vld [vmem:[%s741 + $0x38] sm:$0xff]
    %v750 = vld [vmem:[%s741 + $0x40] sm:$0xff]
    %v751 = vld [vmem:[%s741 + $0x48] sm:$0xff]
    %v752 = vld [vmem:[%s741 + $0x50] sm:$0xff]
    %v753 = vld [vmem:[%s741 + $0x58] sm:$0xff]
    %v754 = vld [vmem:[%s741 + $0x60] sm:$0xff]
    %v755 = vld [vmem:[%s741 + $0x68] sm:$0xff]
    %v756 = vld [vmem:[%s741 + $0x70] sm:$0xff]
    %v757 = vld [vmem:[%s741 + $0x78] sm:$0xff]
    %s758 = scalar_lea.vmem %s4, 2
    %v759 = vld [vmem:[%s758] sm:$0x1]
    %v761 = vlaneseq
    %v762 = vshrl.u32 %v761, 7
    %v763 = vsub.s32 0, %v762
    %v764 = vrot.slane %v759, %v763
    %766 = vmatprep.subr.mxu0 0.0
    %767 = vmatpush1.msra.mxu0 %v742
    %768 = vmatprep.subr.mxu0 0.0
    %769 = vmatpush1.msra.mxu0 %v743
    %770 = vmatprep.subr.mxu0 0.0
    %771 = vmatpush1.msra.mxu0 %v744
    %772 = vmatprep.subr.mxu0 0.0
    %773 = vmatpush1.msra.mxu0 %v745
    %774 = vmatprep.subr.mxu0 0.0
    %775 = vmatpush1.msra.mxu0 %v746
    %776 = vmatprep.subr.mxu0 0.0
    %777 = vmatpush1.msra.mxu0 %v747
    %778 = vmatprep.subr.mxu0 0.0
    %779 = vmatpush1.msra.mxu0 %v748
    %780 = vmatprep.subr.mxu0 0.0
    %781 = vmatpush1.msra.mxu0 %v749
    %782 = vmatprep.subr.mxu0 0.0
    %783 = vmatpush1.msra.mxu0 %v750
    %784 = vmatprep.subr.mxu0 0.0
    %785 = vmatpush1.msra.mxu0 %v751
    %786 = vmatprep.subr.mxu0 0.0
    %787 = vmatpush1.msra.mxu0 %v752
    %788 = vmatprep.subr.mxu0 0.0
    %789 = vmatpush1.msra.mxu0 %v753
    %790 = vmatprep.subr.mxu0 0.0
    %791 = vmatpush1.msra.mxu0 %v754
    %792 = vmatprep.subr.mxu0 0.0
    %793 = vmatpush1.msra.mxu0 %v755
    %794 = vmatprep.subr.mxu0 0.0
    %795 = vmatpush1.msra.mxu0 %v756
    %796 = vmatprep.subr.mxu0 0.0
    %797 = vmatpush1.msra.mxu0 %v757
    %798 = vmatprep.subr.mxu0 0.0
    %799 = vmatpush1.msra.mxu0 0.0
    %800 = vmatprep.subr.mxu0 0.0
    %801 = vmatpush1.msra.mxu0 0.0
    %802 = vmatprep.subr.mxu0 0.0
    %803 = vmatpush1.msra.mxu0 0.0
    %804 = vmatprep.subr.mxu0 0.0
    %805 = vmatpush1.msra.mxu0 0.0
    %806 = vmatprep.subr.mxu0 0.0
    %807 = vmatpush1.msra.mxu0 0.0
    %808 = vmatprep.subr.mxu0 0.0
    %809 = vmatpush1.msra.mxu0 0.0
    %810 = vmatprep.subr.mxu0 0.0
    %811 = vmatpush1.msra.mxu0 0.0
    %812 = vmatprep.subr.mxu0 0.0
    %813 = vmatpush1.msra.mxu0 0.0
    %814 = vmatprep.subr.mxu0 0.0
    %815 = vmatpush1.msra.mxu0 0.0
    %816 = vmatprep.subr.mxu0 0.0
    %817 = vmatpush1.msra.mxu0 0.0
    %818 = vmatprep.subr.mxu0 0.0
    %819 = vmatpush1.msra.mxu0 0.0
    %820 = vmatprep.subr.mxu0 0.0
    %821 = vmatpush1.msra.mxu0 0.0
    %822 = vmatprep.subr.mxu0 0.0
    %823 = vmatpush1.msra.mxu0 0.0
    %824 = vmatprep.subr.mxu0 0.0
    %825 = vmatpush1.msra.mxu0 0.0
    %826 = vmatprep.subr.mxu0 0.0
    %827 = vmatpush1.msra.mxu0 0.0
    %828 = vmatprep.subr.mxu0 0.0
    %829 = vmatpush1.msra.mxu0 0.0
    %830 = vmatprep.mubr.f32.mxu0 0.0
    %831 = vmatmul.mubr.f32.gmra.mrb[0].mxu0 %v740
    %v832 = vpop.f32.mrb[0].mxu0
    %v833 = vadd.f32 %v764, %v832
    %v834 = vpop.f32.mrb[0].mxu0
    %835 = vdwg.mxu0
    %v836 = vmax.f32 %v833, 0.0
    %s837 = scalar_lea.vmem [#allocation6], 256
    %v838 = vld [vmem:[%s837] sm:$0xff]
    %v839 = vld [vmem:[%s837 + $0x8] sm:$0xff]
    %v840 = vld [vmem:[%s837 + $0x10] sm:$0xff]
    %v841 = vld [vmem:[%s837 + $0x18] sm:$0xff]
    %v842 = vld [vmem:[%s837 + $0x20] sm:$0xff]
    %v843 = vld [vmem:[%s837 + $0x28] sm:$0xff]
    %v844 = vld [vmem:[%s837 + $0x30] sm:$0xff]
    %v845 = vld [vmem:[%s837 + $0x38] sm:$0xff]
    %v846 = vld [vmem:[%s837 + $0x40] sm:$0xff]
    %v847 = vld [vmem:[%s837 + $0x48] sm:$0xff]
    %v848 = vld [vmem:[%s837 + $0x50] sm:$0xff]
    %v849 = vld [vmem:[%s837 + $0x58] sm:$0xff]
    %v850 = vld [vmem:[%s837 + $0x60] sm:$0xff]
    %v851 = vld [vmem:[%s837 + $0x68] sm:$0xff]
    %v852 = vld [vmem:[%s837 + $0x70] sm:$0xff]
    %v853 = vld [vmem:[%s837 + $0x78] sm:$0xff]
    %s854 = scalar_lea.vmem %s6, 2
    %v855 = vld [vmem:[%s854] sm:$0x1]
    %v857 = vlaneseq
    %v858 = vshrl.u32 %v857, 7
    %v859 = vsub.s32 0, %v858
    %v860 = vrot.slane %v855, %v859
    %862 = vmatprep.subr.mxu0 0.0
    %863 = vmatpush1.msra.mxu0 %v838
    %864 = vmatprep.subr.mxu0 0.0
    %865 = vmatpush1.msra.mxu0 %v839
    %866 = vmatprep.subr.mxu0 0.0
    %867 = vmatpush1.msra.mxu0 %v840
    %868 = vmatprep.subr.mxu0 0.0
    %869 = vmatpush1.msra.mxu0 %v841
    %870 = vmatprep.subr.mxu0 0.0
    %871 = vmatpush1.msra.mxu0 %v842
    %872 = vmatprep.subr.mxu0 0.0
    %873 = vmatpush1.msra.mxu0 %v843
    %874 = vmatprep.subr.mxu0 0.0
    %875 = vmatpush1.msra.mxu0 %v844
    %876 = vmatprep.subr.mxu0 0.0
    %877 = vmatpush1.msra.mxu0 %v845
    %878 = vmatprep.subr.mxu0 0.0
    %879 = vmatpush1.msra.mxu0 %v846
    %880 = vmatprep.subr.mxu0 0.0
    %881 = vmatpush1.msra.mxu0 %v847
    %882 = vmatprep.subr.mxu0 0.0
    %883 = vmatpush1.msra.mxu0 %v848
    %884 = vmatprep.subr.mxu0 0.0
    %885 = vmatpush1.msra.mxu0 %v849
    %886 = vmatprep.subr.mxu0 0.0
    %887 = vmatpush1.msra.mxu0 %v850
    %888 = vmatprep.subr.mxu0 0.0
    %889 = vmatpush1.msra.mxu0 %v851
    %890 = vmatprep.subr.mxu0 0.0
    %891 = vmatpush1.msra.mxu0 %v852
    %892 = vmatprep.subr.mxu0 0.0
    %893 = vmatpush1.msra.mxu0 %v853
    %894 = vmatprep.subr.mxu0 0.0
    %895 = vmatpush1.msra.mxu0 0.0
    %896 = vmatprep.subr.mxu0 0.0
    %897 = vmatpush1.msra.mxu0 0.0
    %898 = vmatprep.subr.mxu0 0.0
    %899 = vmatpush1.msra.mxu0 0.0
    %900 = vmatprep.subr.mxu0 0.0
    %901 = vmatpush1.msra.mxu0 0.0
    %902 = vmatprep.subr.mxu0 0.0
    %903 = vmatpush1.msra.mxu0 0.0
    %904 = vmatprep.subr.mxu0 0.0
    %905 = vmatpush1.msra.mxu0 0.0
    %906 = vmatprep.subr.mxu0 0.0
    %907 = vmatpush1.msra.mxu0 0.0
    %908 = vmatprep.subr.mxu0 0.0
    %909 = vmatpush1.msra.mxu0 0.0
    %910 = vmatprep.subr.mxu0 0.0
    %911 = vmatpush1.msra.mxu0 0.0
    %912 = vmatprep.subr.mxu0 0.0
    %913 = vmatpush1.msra.mxu0 0.0
    %914 = vmatprep.subr.mxu0 0.0
    %915 = vmatpush1.msra.mxu0 0.0
    %916 = vmatprep.subr.mxu0 0.0
    %917 = vmatpush1.msra.mxu0 0.0
    %918 = vmatprep.subr.mxu0 0.0
    %919 = vmatpush1.msra.mxu0 0.0
    %920 = vmatprep.subr.mxu0 0.0
    %921 = vmatpush1.msra.mxu0 0.0
    %922 = vmatprep.subr.mxu0 0.0
    %923 = vmatpush1.msra.mxu0 0.0
    %924 = vmatprep.subr.mxu0 0.0
    %925 = vmatpush1.msra.mxu0 0.0
    %926 = vmatprep.mubr.f32.mxu0 0.0
    %927 = vmatmul.mubr.f32.gmra.mrb[0].mxu0 %v836
    %v928 = vpop.f32.mrb[0].mxu0
    %v929 = vadd.f32 %v860, %v928
    %v930 = vpop.f32.mrb[0].mxu0
    %931 = vdwg.mxu0
    %v932 = vmax.f32 %v929, 0.0
    %v933 = vmin.f32 %v932, %v644
    %s934 = scalar_lea.vmem %s7, 16
    %935 = vst [vmem:[%s934] sm:$0xff] %v933
    // Predicated region
    $region42: #{appliances_rnn_forward.1} parent=1 // pred_check
      _
    $region43: #{appliances_rnn_forward.1} parent=1 // pred_check_branch
      %937 = sbr.rel (0) target = $region45
    $region44: #{appliances_rnn_forward.1} parent=1 // pred_region
      _
    $region45: #{appliances_rnn_forward.1} parent=1 // pred_fallthru
      _
    // Predicated region
    $region46: #{appliances_rnn_forward.1} parent=1 // pred_check
      _
    $region47: #{appliances_rnn_forward.1} parent=1 // pred_check_branch
      %939 = sbr.rel (0) target = $region49
    $region48: #{appliances_rnn_forward.1} parent=1 // pred_region
      _
    $region49: #{appliances_rnn_forward.1} parent=1 // pred_fallthru
      _
    %940 = vsyncpa [#allocation3], 1
    %941 = vsyncpa [#allocation5], 1

</llo_original>
